<compile_context>
chip_gen: v7x
topology: tpu7x:2x2x1
jax: 0.10.0
libtpu: 0.0.40
codegen_flags: <defaults>
</compile_context>

<pallas_src>
import functools

import jax
import jax.numpy as jnp
import numpy as np
from jax import lax
from jax.experimental import pallas as pl
from jax.experimental.pallas import tpu as pltpu


_NT_DIMS = (((1,), (1,)), ((), ()))   # contract last dim of both operands: A @ B^T


def _num_parts(dtype, *, exact):
    # bf16/fp16 inputs: a single bf16 one-hot matmul pass is already exact.
    if jnp.dtype(dtype).itemsize <= 2:
        return 1
    # f32 inputs: split into bf16 parts so the one-hot matmul reproduces the f32 values
    # (2 parts -> ~8e-6 rel err, plenty for scores; 3 parts -> ~1e-7, near bit-exact gather).
    return 3 if exact else 2


def _split_bf16(x_f32, n_parts):
    """Split a f32 array into n_parts bf16 arrays whose (f32-accumulated) sum ~= x."""
    if n_parts == 1:
        return [x_f32.astype(jnp.bfloat16)]
    parts = []
    resid = x_f32
    for _ in range(n_parts - 1):
        p = resid.astype(jnp.bfloat16)
        parts.append(p)
        resid = resid - p.astype(jnp.float32)
    parts.append(resid.astype(jnp.bfloat16))
    return parts


def _vmem_limit(in_block_bytes, out_block_bytes):
    # 2 pipeline buffers per operand + headroom for the in-kernel f32/bf16 temporaries
    # (f32 copy, bf16 parts, one-hot matrix, accumulator); clamp inside v7x's 64 MiB VMEM.
    need = 2 * (in_block_bytes + out_block_bytes) + 8 * in_block_bytes + (2 << 20)
    return int(min(max(need, 8 << 20), 40 << 20))


# ---------------------------------------------------------------------------
# Pallas kernel 1: per-token manhattan distance to the group-reference token
#   o[b, t] = sum_c | x[b, c, t] - x[b, c, ref(t)] |          (native (C, HW) tile, HW on lanes)
# ref(t) is static (group top-left).  The gather x[:, ref(t)] is done as x @ P with P the
# per-column one-hot matrix (MXU), avoiding any lane shift / unaligned slice copies.
# ---------------------------------------------------------------------------
def _dist_kernel(refcol_ref, x_ref, o_ref, *, n_parts):
    HW = x_ref.shape[2]
    x = x_ref[0].astype(jnp.float32)                               # (C, HW)
    refcol = refcol_ref[0]                                         # (1, HW) int32: source token per column
    rows = lax.broadcasted_iota(jnp.int32, (HW, HW), 0)
    P = jnp.where(rows == refcol, 1.0, 0.0).astype(jnp.bfloat16)   # (HW, HW) one-hot columns
    xr = None
    for part in _split_bf16(x, n_parts):                           # MXU: xr[:, t] = x[:, ref(t)]
        term = jnp.dot(part, P, preferred_element_type=jnp.float32)
        xr = term if xr is None else xr + term
    d = jnp.abs(x - xr)                                            # VPU
    o_ref[0] = jnp.sum(d, axis=0, keepdims=True)                   # XLU sublane reduce -> (1, HW), lane-dense


def token_group_scores_pallas(x3, feature_size, group_size):
    B, C, HW = x3.shape
    H, W = feature_size
    gh, gw = group_size
    assert H * W == HW and H % gh == 0 and W % gw == 0
    t = np.arange(HW)
    dmap = (((t // W) % gh) * W + (t % W) % gw)                    # in-group flat offset
    refcol = jnp.asarray((t - dmap).astype(np.int32).reshape(1, 1, HW))
    n_parts = _num_parts(x3.dtype, exact=False)
    in_block = C * HW * x3.dtype.itemsize
    out_block = HW * 4
    cost = pl.CostEstimate(
        flops=int(B * (2 * n_parts * C * HW * HW + 6 * C * HW)),
        transcendentals=0,
        bytes_accessed=int(B * (in_block + out_block) + HW * 4),
    )
    return pl.pallas_call(
        functools.partial(_dist_kernel, n_parts=n_parts),
        out_shape=jax.ShapeDtypeStruct((B, 1, HW), jnp.float32),
        grid=(B,),
        in_specs=[
            pl.BlockSpec((1, 1, HW), lambda b: (0, 0, 0)),          # static ref map, stays resident
            pl.BlockSpec((1, C, HW), lambda b: (b, 0, 0)),          # native layout, no host transpose
        ],
        out_specs=pl.BlockSpec((1, 1, HW), lambda b: (b, 0, 0)),
        compiler_params=pltpu.CompilerParams(
            dimension_semantics=("parallel",),                      # v7x: 2 TCs split the batch
            vmem_limit_bytes=_vmem_limit(in_block, out_block),
        ),
        cost_estimate=cost,
    )(refcol, x3)


# ---------------------------------------------------------------------------
# Pallas kernel 2: token gather with fused (C, HW) -> (L, C) layout change
#   out[b, j, :] = x[b, :, token_idx[b, j]]
# Implemented as S @ X^T with S the (L, HW) one-hot row-select matrix (built in-kernel from
# token_idx vs a lane iota) so the gather, the transpose and the (L, C) store fuse into one
# MXU pass; works for arbitrary token_idx (no sortedness/shift-range assumption).
# ---------------------------------------------------------------------------
def _gather_kernel(tok_ref, x_ref, o_ref, *, n_parts):
    L = tok_ref.shape[1]
    HW = x_ref.shape[2]
    x = x_ref[0].astype(jnp.float32)                               # (C, HW)
    tok = tok_ref[0]                                               # (L, 1) int32
    cols = lax.broadcasted_iota(jnp.int32, (L, HW), 1)
    S = jnp.where(cols == tok, 1.0, 0.0).astype(jnp.bfloat16)      # (L, HW) one-hot rows
    out = None
    for part in _split_bf16(x, n_parts):                           # (L,HW) . (C,HW)^T -> (L,C)
        term = lax.dot_general(S, part, _NT_DIMS, preferred_element_type=jnp.float32)
        out = term if out is None else out + term
    o_ref[0] = out.astype(o_ref.dtype)                             # lane-dense (C innermost) store


def gather_tokens_pallas(x3, token_idx):
    B, C, HW = x3.shape
    L = token_idx.shape[1]
    tok = token_idx.astype(jnp.int32).reshape(B, L, 1)
    n_parts = _num_parts(x3.dtype, exact=True)
    in_block = C * HW * x3.dtype.itemsize
    out_block = L * C * x3.dtype.itemsize
    cost = pl.CostEstimate(
        flops=int(B * 2 * n_parts * L * HW * C),
        transcendentals=0,
        bytes_accessed=int(B * (in_block + out_block + L * 4)),
    )
    return pl.pallas_call(
        functools.partial(_gather_kernel, n_parts=n_parts),
        out_shape=jax.ShapeDtypeStruct((B, L, C), x3.dtype),
        grid=(B,),
        in_specs=[
            pl.BlockSpec((1, L, 1), lambda b: (b, 0, 0)),
            pl.BlockSpec((1, C, HW), lambda b: (b, 0, 0)),          # same native view as kernel 1
        ],
        out_specs=pl.BlockSpec((1, L, C), lambda b: (b, 0, 0)),
        compiler_params=pltpu.CompilerParams(
            dimension_semantics=("parallel",),
            vmem_limit_bytes=_vmem_limit(in_block, out_block),
        ),
        cost_estimate=cost,
    )(tok, x3)


# ---------------------------------------------------------------------------
# Plain-JAX glue (index bookkeeping; mirrors SortIndex / AlignTokenIdx / SelectToken)
# ---------------------------------------------------------------------------
def gen_token_idx2(feature_size, group_size):
    Hf, Wf = feature_size
    gh, gw = group_size
    Hg, Wg = Hf // gh, Wf // gw
    idx = jnp.arange(Hf * Wf, dtype=jnp.int32)
    # rearrange '(h hp w wp) -> (hp wp) (h w)'
    return idx.reshape(Hg, gh, Wg, gw).transpose(1, 3, 0, 2).reshape(gh * gw, Hg * Wg)


def _index_bookkeeping(score, token_idx2, M, group_size, token_pos):
    B, G = score.shape
    P = token_idx2.shape[0]
    gh, gw = group_size
    # SortIndex
    # TODO(synk): stable argsort has no Pallas TPU primitive; done with XLA's sort.
    order = jnp.argsort(score, axis=1, stable=True).astype(jnp.int32)
    idx_merge = order[:, :M]                                    # group ids
    idx_keep = order[:, M:]                                     # group ids
    keep_pix = jnp.take_along_axis(
        jnp.broadcast_to(token_idx2[None], (B, P, G)),
        jnp.broadcast_to(idx_keep[:, None, :], (B, P, G - M)),
        axis=2,
    ).reshape(B, P * (G - M))
    token_idx = jnp.concatenate([idx_merge, keep_pix], axis=1)  # (B, L)
    # SelectToken ('keep1'): AlignTokenIdx + sort
    pos_row = token_pos[1] * gh + token_pos[0]
    merge_pix = jnp.take_along_axis(
        jnp.broadcast_to(token_idx2[pos_row][None], (B, G)), token_idx[:, :M], axis=1
    )
    token_idx = jnp.concatenate([merge_pix, token_idx[:, M:]], axis=1)
    return jnp.sort(token_idx, axis=1)


def nepam_ablation_forward(x, *, group_size=(2, 2), merge_group_num=2, token_pos=(0, 0)):
    B, C, H, W = x.shape
    gh, gw = group_size
    Hg, Wg = H // gh, W // gw
    P, G, HW = gh * gw, Hg * Wg, H * W

    x3 = x.reshape(B, C, HW)                                     # free view, no HBM pass

    # hot path 1: per-token manhattan distance to the group reference (Pallas)
    d_tok = token_group_scores_pallas(x3, (H, W), group_size)    # (B, 1, HW) f32

    # tiny glue: group average pool + sort/select bookkeeping (XLA, O(B*HW) scalars)
    score = d_tok.reshape(B, Hg, gh, Wg, gw).sum(axis=(2, 4)).reshape(B, G) / float(P * C)
    token_idx2 = gen_token_idx2((H, W), group_size)
    token_idx = _index_bookkeeping(score, token_idx2, merge_group_num, group_size, token_pos)

    # hot path 2: token gather with fused transpose (Pallas)
    x_out = gather_tokens_pallas(x3, token_idx)                   # (B, L, C)
    return x_out, token_idx


# ---------------------------------------------------------------------------
# Pure-JAX reference for correctness checking
# ---------------------------------------------------------------------------
def reference_forward(x, *, group_size=(2, 2), merge_group_num=2, token_pos=(0, 0)):
    B, C, H, W = x.shape
    gh, gw = group_size
    Hg, Wg = H // gh, W // gw
    token_idx2 = gen_token_idx2((H, W), group_size)
    x_ref = jnp.repeat(jnp.repeat(x[:, :, ::gh, ::gw], gh, axis=2), gw, axis=3)
    dist = jnp.mean(jnp.abs(x_ref - x), axis=1)                   # (B, H, W)
    score = dist.reshape(B, Hg, gh, Wg, gw).mean(axis=(2, 4)).reshape(B, Hg * Wg)
    token_idx = _index_bookkeeping(score, token_idx2, merge_group_num, group_size, token_pos)
    L = token_idx.shape[1]
    x_out = jnp.take_along_axis(
        x.reshape(B, C, H * W),
        jnp.broadcast_to(token_idx[:, None, :], (B, C, L)),
        axis=2,
    ).transpose(0, 2, 1)
    return x_out, token_idx


if __name__ == "__main__":
    # Small analog of NepamAblation(patch_size=(4,4), img_size=(16,16), group_size=(2,2),
    #                               merge_group_num=2, merge_method='keep1', distance='manhattan')
    B = 2
    patch = (4, 4)
    img = (16, 16)
    group_size = (2, 2)
    merge_group_num = 2
    channel_num = 3 * patch[0] * patch[1]                  # 48
    feat = (img[0] // patch[0], img[1] // patch[1])        # (4, 4)

    key = jax.random.PRNGKey(0)
    x = jax.random.normal(key, (B, channel_num, feat[0], feat[1]), dtype=jnp.float32)

    x_out, token_idx = nepam_ablation_forward(
        x, group_size=group_size, merge_group_num=merge_group_num, token_pos=(0, 0)
    )
    jax.block_until_ready((x_out, token_idx))

    x_out_ref, token_idx_ref = reference_forward(
        x, group_size=group_size, merge_group_num=merge_group_num, token_pos=(0, 0)
    )
    assert jnp.array_equal(token_idx, token_idx_ref), "token_idx mismatch"
    assert jnp.allclose(x_out, x_out_ref, atol=1e-5, rtol=1e-5), "gathered tokens mismatch"

    print("KERNEL_OK")
</pallas_src>

<mosaic_0001>
module attributes {stable_mosaic.version = 11 : i64} {
  func.func @_dist_kernel(%arg0: i32, %arg1: memref<1x1x16xi32, #tpu.memory_space<vmem>>, %arg2: memref<1x48x16xf32, #tpu.memory_space<vmem>>, %arg3: memref<1x1x16xf32, #tpu.memory_space<vmem>>) attributes {dimension_semantics = [#tpu.dimension_semantics<parallel>], iteration_bounds = array<i64: 2>, scalar_prefetch = 0 : i64, scratch_operands = 0 : i64, tpu.core_type = #tpu.core_type<tc>, window_params = [{pipeline_mode = #tpu.pipeline_mode<synchronous>, transform_indices = @transform_0, window_bounds = array<i64: 1, 1, 16>}, {transform_indices = @transform_1, window_bounds = array<i64: 1, 48, 16>}, {transform_indices = @transform_2, window_bounds = array<i64: 1, 1, 16>}]} {
    %c0 = arith.constant 0 : index
    %c0_0 = arith.constant 0 : index
    %c0_1 = arith.constant 0 : index
    %0 = vector.load %arg2[%c0, %c0_0, %c0_1] : memref<1x48x16xf32, #tpu.memory_space<vmem>>, vector<1x48x16xf32>
    %1 = vector.shape_cast %0 : vector<1x48x16xf32> to vector<48x16xf32>
    %c0_2 = arith.constant 0 : index
    %c0_3 = arith.constant 0 : index
    %c0_4 = arith.constant 0 : index
    %2 = vector.load %arg1[%c0_2, %c0_3, %c0_4] : memref<1x1x16xi32, #tpu.memory_space<vmem>>, vector<1x1x16xi32>
    %3 = vector.shape_cast %2 : vector<1x1x16xi32> to vector<1x16xi32>
    %4 = tpu.iota {dimensions = array<i32: 0>} : vector<16x16xi32>
    %5 = vector.broadcast %3 : vector<1x16xi32> to vector<16x16xi32>
    %6 = arith.cmpi eq, %4, %5 : vector<16x16xi32>
    %cst = arith.constant 1.000000e+00 : f32
    %cst_5 = arith.constant 0.000000e+00 : f32
    %7 = vector.broadcast %cst : f32 to vector<16x16xf32>
    %8 = vector.broadcast %cst_5 : f32 to vector<16x16xf32>
    %9 = arith.select %6, %7, %8 : vector<16x16xi1>, vector<16x16xf32>
    %10 = arith.truncf %9 : vector<16x16xf32> to vector<16x16xbf16>
    %11 = arith.truncf %1 : vector<48x16xf32> to vector<48x16xbf16>
    %12 = arith.extf %11 : vector<48x16xbf16> to vector<48x16xf32>
    %13 = arith.subf %1, %12 : vector<48x16xf32>
    %14 = arith.truncf %13 : vector<48x16xf32> to vector<48x16xbf16>
    %cst_6 = arith.constant dense<0.000000e+00> : vector<48x16xf32>
    %15 = tpu.matmul %11, %10, %cst_6 {dimension_numbers = #tpu.dot_dimension_numbers<[1], [0], [0], [1], [0, 0, 1, 1], [], []>} : vector<48x16xbf16>, vector<16x16xbf16>, vector<48x16xf32> -> vector<48x16xf32>
    %cst_7 = arith.constant dense<0.000000e+00> : vector<48x16xf32>
    %16 = tpu.matmul %14, %10, %cst_7 {dimension_numbers = #tpu.dot_dimension_numbers<[1], [0], [0], [1], [0, 0, 1, 1], [], []>} : vector<48x16xbf16>, vector<16x16xbf16>, vector<48x16xf32> -> vector<48x16xf32>
    %17 = arith.addf %15, %16 : vector<48x16xf32>
    %18 = arith.subf %1, %17 : vector<48x16xf32>
    %19 = math.absf %18 : vector<48x16xf32>
    %cst_8 = arith.constant dense<0.000000e+00> : vector<16xf32>
    %20 = vector.multi_reduction <add>, %19, %cst_8 [0] : vector<48x16xf32> to vector<16xf32>
    %21 = vector.shape_cast %20 : vector<16xf32> to vector<1x16xf32>
    %c0_9 = arith.constant 0 : index
    %c0_10 = arith.constant 0 : index
    %c0_11 = arith.constant 0 : index
    %22 = vector.load %arg3[%c0_9, %c0_10, %c0_11] : memref<1x1x16xf32, #tpu.memory_space<vmem>>, vector<1x1x16xf32>
    %23 = vector.shape_cast %22 : vector<1x1x16xf32> to vector<1x16xf32>
    %24 = vector.shape_cast %21 : vector<1x16xf32> to vector<1x1x16xf32>
    tpu.vector_store %arg3[%c0_9, %c0_10, %c0_11], %24 {strides = array<i32>} : memref<1x1x16xf32, #tpu.memory_space<vmem>>, vector<1x1x16xf32>,
    return
  }
  func.func @transform_0(%arg0: i32) -> (i32, i32, i32) {
    %c0_i32 = arith.constant 0 : i32
    %c0_i32_0 = arith.constant 0 : i32
    %c0_i32_1 = arith.constant 0 : i32
    %c0_i32_2 = arith.constant 0 : i32
    return %c0_i32, %c0_i32_0, %c0_i32_1 : i32, i32, i32
  }
  func.func @transform_1(%arg0: i32) -> (i32, i32, i32) {
    %c0_i32 = arith.constant 0 : i32
    %c0_i32_0 = arith.constant 0 : i32
    %c0_i32_1 = arith.constant 0 : i32
    return %arg0, %c0_i32, %c0_i32_0 : i32, i32, i32
  }
  func.func @transform_2(%arg0: i32) -> (i32, i32, i32) {
    %c0_i32 = arith.constant 0 : i32
    %c0_i32_0 = arith.constant 0 : i32
    %c0_i32_1 = arith.constant 0 : i32
    return %arg0, %c0_i32, %c0_i32_0 : i32, i32, i32
  }
}

</mosaic_0001>

<llo_original>
// kernel: tpu_custom_call.1
$region0: #{tpu_custom_call.1}
  #allocation0 [shape = 'u32[]', space=smem, size = 0x4, offset = 0x4, fixed_abs, tag = 'smem constant byte address 0x4 - core index']
  #allocation1 [shape = 'u32[144,128]{1,0:T(1,128)}', space=vmem, size = 0x12000, scoped, tag = 'internal scratch']
  %s0 = inlined_call_operand.vmem [shape: s32[1,1,16], index: 0, kind: input, shape index: {}]
  %s1 = inlined_call_operand.vmem [shape: f32[2,48,16], index: 1, kind: input, shape index: {}]
  %s2 = inlined_call_operand.hbm [shape: f32[2,1,16], index: 2, kind: output, shape index: {}]
  %s3 = sld [smem:[#allocation0]]
  $region41: #{tpu_custom_call.1} parent=0
    _
  %s5 = ssub.s32 1, %s3
  %s6 = scalar_select 0, %s5, %s3
  $region1: #{tpu_custom_call.1} parent=0
    #allocation2 [shape = 'u8[1024]{0}', space=vmem, size = 0x400, scoped, tag = 'output window, operand 0']
    #allocation3 [shape = 's32[2]{0}', space=sflag, size = 0x8, scoped, tag = 'scoped memory for tpu_custom_call.1']
    %7 = vsyncpa [#allocation3], 0
    %s8 = scalar_lea.sflag [#allocation3], 1
    %9 = vsyncpa %s8, 0
    loop: start=0, step=1, limit=4
    $region2: #{tpu_custom_call.1} parent=1 // loop_pre_header
      _
    $region3: #{tpu_custom_call.1} parent=1 // loop_header
      %s11 = sphi 0, %s15
      %p12 = scmp.ge.s32.totalorder %s11, 4
      %s19 = sphi 0, %s19
      %s21 = sphi 0, %s19
      %s22 = sphi 0, %s21
      %s36 = sphi 0, %s22
      %s42 = sphi 0, %s44
      %s45 = sphi 0, %s42
      %s46 = sphi 0, %s45
      %s62 = sphi 0, %s46
      %s68 = sphi 0, %s70
      %s71 = sphi 0, %s68
      %s72 = sphi 0, %s71
      %s88 = sphi 0, %s72
    $region4: #{tpu_custom_call.1} parent=1 // loop_header_branch
      %14 = sbr.rel (%p12) target = $region8
    $region5: #{tpu_custom_call.1} parent=1 // loop_body
      %s16 = ssub.s32 %s11, 1
      %s17 = ssub.s32 %s11, 2
      %s18 = sadd.s32 %s11, 1
      %s20 = sadd.s32 %s19, 1
      %p23 = scmp.eq.s32.totalorder %s11, 1
      %p24 = scmp.ne.s32.totalorder %s19, %s21
      %p25 = scmp.eq.s32.totalorder %s11, 0
      %p26 = por %p24, %p25
      %p27 = scmp.ne.s32.totalorder %s19, %s21
      %p28 = scmp.eq.s32.totalorder %s16, 1
      %p29 = por %p27, %p28
      %p30 = scmp.ne.s32.totalorder %s21, %s22
      %p31 = scmp.eq.s32.totalorder %s16, 0
      %p32 = por %p30, %p31
      %p33 = scmp.ne.s32.totalorder %s21, %s22
      %p34 = scmp.eq.s32.totalorder %s17, 1
      %p35 = por %p33, %p34
      %p37 = scmp.ne.s32.totalorder %s22, %s36
      %p38 = scmp.eq.s32.totalorder %s17, 0
      %p39 = por %p37, %p38
      %s40 = ssub.s32 %s11, %s18
      %p41 = scmp.eq.s32.totalorder %s40, 0
      %s43 = sadd.s32 %s42, 1
      %s44 = scalar_select %p41, %s42, %s43
      %p47 = pneg %p41
      %p48 = scmp.eq.s32.totalorder %s11, 1
      %p49 = por %p47, %p48
      %p50 = scmp.ne.s32.totalorder %s42, %s45
      %p51 = scmp.eq.s32.totalorder %s11, 0
      %p52 = por %p50, %p51
      %p53 = scmp.ne.s32.totalorder %s42, %s45
      %p54 = scmp.eq.s32.totalorder %s16, 1
      %p55 = por %p53, %p54
      %p56 = scmp.ne.s32.totalorder %s45, %s46
      %p57 = scmp.eq.s32.totalorder %s16, 0
      %p58 = por %p56, %p57
      %p59 = scmp.ne.s32.totalorder %s45, %s46
      %p60 = scmp.eq.s32.totalorder %s17, 1
      %p61 = por %p59, %p60
      %p63 = scmp.ne.s32.totalorder %s46, %s62
      %p64 = scmp.eq.s32.totalorder %s17, 0
      %p65 = por %p63, %p64
      %s66 = ssub.s32 %s11, %s18
      %p67 = scmp.eq.s32.totalorder %s66, 0
      %s69 = sadd.s32 %s68, 1
      %s70 = scalar_select %p67, %s68, %s69
      %p73 = pneg %p67
      %p74 = scmp.eq.s32.totalorder %s11, 1
      %p75 = por %p73, %p74
      %p76 = scmp.ne.s32.totalorder %s68, %s71
      %p77 = scmp.eq.s32.totalorder %s11, 0
      %p78 = por %p76, %p77
      %p79 = scmp.ne.s32.totalorder %s68, %s71
      %p80 = scmp.eq.s32.totalorder %s16, 1
      %p81 = por %p79, %p80
      %p82 = scmp.ne.s32.totalorder %s71, %s72
      %p83 = scmp.eq.s32.totalorder %s16, 0
      %p84 = por %p82, %p83
      %p85 = scmp.ne.s32.totalorder %s71, %s72
      %p86 = scmp.eq.s32.totalorder %s17, 1
      %p87 = por %p85, %p86
      %p89 = scmp.ne.s32.totalorder %s72, %s88
      %p90 = scmp.eq.s32.totalorder %s17, 0
      %p91 = por %p89, %p90
      %p92 = scmp.le.s32.totalorder 1, %s11
      %p93 = scmp.lt.s32.totalorder %s11, 3
      %p94 = pnand %p92, %p93
      %p95 = pneg %p94
      // Predicated region
      $region9: #{tpu_custom_call.1} parent=5 // pred_check
        _
      $region10: #{tpu_custom_call.1} parent=5 // pred_check_branch
        %97 = sbr.rel (%p94) target = $region12
      $region11: #{tpu_custom_call.1} parent=5 // pred_region
        %s98 = ssub.s32 %s11, 1
        // Predicated region
        $region13: #{tpu_custom_call.1} parent=11 // pred_check
          %p99 = pneg %p32
        $region14: #{tpu_custom_call.1} parent=11 // pred_check_branch
          %101 = sbr.rel (%p99) target = $region16
        $region15: #{tpu_custom_call.1} parent=11 // pred_region
          _
        $region16: #{tpu_custom_call.1} parent=11 // pred_fallthru
          _
      $region12: #{tpu_custom_call.1} parent=5 // pred_fallthru
        _
      %p102 = scmp.lt.s32.totalorder %s11, 2
      // Predicated region
      $region17: #{tpu_custom_call.1} parent=5 // pred_check
        %p103 = pneg %p102
      $region18: #{tpu_custom_call.1} parent=5 // pred_check_branch
        %105 = sbr.rel (%p103) target = $region20
      $region19: #{tpu_custom_call.1} parent=5 // pred_region
        // Predicated region
        $region21: #{tpu_custom_call.1} parent=19 // pred_check
          %p106 = pneg %p52
        $region22: #{tpu_custom_call.1} parent=19 // pred_check_branch
          %108 = sbr.rel (%p106) target = $region24
        $region23: #{tpu_custom_call.1} parent=19 // pred_region
          %p109 = scmp.lt.s32.totalorder %s11, 1
          %s110 = scalar_select %p109, %s11, 1
          %s111 = smul.addr %s110, 6
          %s112 = smul.addr %s111, 8
          %s113 = scalar_lea.vmem %s1, %s112
        $region24: #{tpu_custom_call.1} parent=19 // pred_fallthru
          _
      $region20: #{tpu_custom_call.1} parent=5 // pred_fallthru
        _
      %p114 = scmp.le.s32.totalorder 1, %s11
      %p115 = scmp.lt.s32.totalorder %s11, 3
      %p116 = pnand %p114, %p115
      %p117 = pneg %p116
      // Predicated region
      $region25: #{tpu_custom_call.1} parent=5 // pred_check
        _
      $region26: #{tpu_custom_call.1} parent=5 // pred_check_branch
        %119 = sbr.rel (%p116) target = $region28
      $region27: #{tpu_custom_call.1} parent=5 // pred_region
        %s120 = ssub.s32 %s11, 1
        %p121 = pneg %p32
        %p122 = pneg %p29
        %p123 = scmp.lt.s32.totalorder %s16, 1
        %s124 = scalar_select %p123, %s16, 1
        %s125 = smul.addr %s124, 6
        %s126 = smul.addr %s125, 8
        %s127 = scalar_lea.vmem %s1, %s126
        %p128 = pneg %p58
        %p129 = pneg %p55
        %p130 = pneg %p84
        %p131 = pneg %p81
        %s132 = sand.u32 %s71, 1
        %s133 = scalar_lea.sflag [#allocation3], %s132
        %s134 = sand.u32 %s71, 1
        %s135 = scalar_lea.vmem [#allocation2], %s134
        %p136 = scmp.lt.s32.totalorder %s16, 1
        %s137 = scalar_select %p136, %s16, 1
        %s138 = smul.addr %s137, 6
        %s139 = smul.addr %s138, 8
        %s140 = scalar_lea.vmem %s1, %s139
        %v142 = vld [vmem:[%s140] sm:$0xff]
        %v143 = vld [vmem:[%s140 + $0x8] sm:$0xff]
        %v144 = vld [vmem:[%s140 + $0x10] sm:$0xff]
        %v145 = vld [vmem:[%s140 + $0x18] sm:$0xff]
        %v146 = vld [vmem:[%s140 + $0x20] sm:$0xff]
        %v147 = vld [vmem:[%s140 + $0x28] sm:$0xff]
        %v148 = vld [vmem:[%s0] sm:$0x1]
        %v149 = vlaneseq
        %v150 = vshrl.u32 %v149, 7
        %v151 = vadd.s32 %v150, 8
        %v152 = vlaneseq
        %v153 = vshrl.u32 %v152, 7
        %v154 = vsub.s32 0, %v153
        %v155 = vrot.slane %v148, %v154
        %vm156 = vcmp.eq.s32.totalorder %v150, %v155
        %vm157 = vcmp.eq.s32.totalorder %v151, %v155
        %v158 = vsel %vm156, 1.0, 0.0
        %v159 = vsel %vm157, 1.0, 0.0
        %v160 = vpack.c.bf16 %v159, %v158
        %v161 = vpack.c.bf16 %v143, %v142
        %v162 = vpack.c.bf16 %v145, %v144
        %v163 = vpack.c.bf16 %v147, %v146
        %v164 = vunpack.c.l.bf16 %v161
        %v165 = vunpack.c.h.bf16 %v161
        %v166 = vunpack.c.l.bf16 %v162
        %v167 = vunpack.c.h.bf16 %v162
        %v168 = vunpack.c.l.bf16 %v163
        %v169 = vunpack.c.h.bf16 %v163
        %v170 = vsub.f32 %v142, %v164
        %v171 = vsub.f32 %v143, %v165
        %v172 = vsub.f32 %v144, %v166
        %v173 = vsub.f32 %v145, %v167
        %v174 = vsub.f32 %v146, %v168
        %v175 = vsub.f32 %v147, %v169
        %v176 = vpack.c.bf16 %v171, %v170
        %v177 = vpack.c.bf16 %v173, %v172
        %v178 = vpack.c.bf16 %v175, %v174
        %vm179 = vcmask 130048
        %v181 = vsel %vm179, %v176, 0
        %v184 = vsel %vm179, %v177, 0
        %v187 = vsel %vm179, %v178, 0
        %189 = vmatprep.subr.bf16.mxu0 0
        %190 = vmatpush1.bf16.msra.mxu0 %v160
        %191 = vmatprep.subr.bf16.mxu0 0
        %192 = vmatpush1.bf16.msra.mxu0 0
        %193 = vmatprep.subr.bf16.mxu0 0
        %194 = vmatpush1.bf16.msra.mxu0 0
        %195 = vmatprep.subr.bf16.mxu0 0
        %196 = vmatpush1.bf16.msra.mxu0 0
        %197 = vmatprep.subr.bf16.mxu0 0
        %198 = vmatpush1.bf16.msra.mxu0 0
        %199 = vmatprep.subr.bf16.mxu0 0
        %200 = vmatpush1.bf16.msra.mxu0 0
        %201 = vmatprep.subr.bf16.mxu0 0
        %202 = vmatpush1.bf16.msra.mxu0 0
        %203 = vmatprep.subr.bf16.mxu0 0
        %204 = vmatpush1.bf16.msra.mxu0 0
        %205 = vmatprep.subr.bf16.mxu0 0
        %206 = vmatpush1.bf16.msra.mxu0 0
        %207 = vmatprep.subr.bf16.mxu0 0
        %208 = vmatpush1.bf16.msra.mxu0 0
        %209 = vmatprep.subr.bf16.mxu0 0
        %210 = vmatpush1.bf16.msra.mxu0 0
        %211 = vmatprep.subr.bf16.mxu0 0
        %212 = vmatpush1.bf16.msra.mxu0 0
        %213 = vmatprep.subr.bf16.mxu0 0
        %214 = vmatpush1.bf16.msra.mxu0 0
        %215 = vmatprep.subr.bf16.mxu0 0
        %216 = vmatpush1.bf16.msra.mxu0 0
        %217 = vmatprep.subr.bf16.mxu0 0
        %218 = vmatpush1.bf16.msra.mxu0 0
        %219 = vmatprep.subr.bf16.mxu0 0
        %220 = vmatpush1.bf16.msra.mxu0 0
        %221 = vmatprep.mubr.bf16.mxu0 0
        %222 = vmatmul.mubr.bf16.gmra.mrb[0].mxu0 %v181
        %v223 = vpop.f32.mrb[0].mxu0
        %v224 = vadd.f32 0.0, %v223
        %v225 = vpop.f32.mrb[0].mxu0
        %v226 = vpop.f32.mrb[0].mxu0
        %v227 = vadd.f32 0.0, %v226
        %v228 = vpop.f32.mrb[0].mxu0
        %229 = vmatprep.mubr.bf16.mxu0 0
        %230 = vmatmul.mubr.bf16.gmra.mrb[0].mxu0 %v184
        %v231 = vpop.f32.mrb[0].mxu0
        %v232 = vadd.f32 0.0, %v231
        %v233 = vpop.f32.mrb[0].mxu0
        %v234 = vpop.f32.mrb[0].mxu0
        %v235 = vadd.f32 0.0, %v234
        %v236 = vpop.f32.mrb[0].mxu0
        %237 = vmatprep.mubr.bf16.mxu0 0
        %238 = vmatmul.mubr.bf16.gmra.mrb[0].mxu0 %v187
        %v239 = vpop.f32.mrb[0].mxu0
        %v240 = vadd.f32 0.0, %v239
        %v241 = vpop.f32.mrb[0].mxu0
        %v242 = vpop.f32.mrb[0].mxu0
        %v243 = vadd.f32 0.0, %v242
        %v244 = vpop.f32.mrb[0].mxu0
        %245 = vdwg.mxu0
        %v247 = vsel %vm179, %v161, 0
        %v250 = vsel %vm179, %v162, 0
        %v253 = vsel %vm179, %v163, 0
        %255 = vmatprep.subr.bf16.mxu0 0
        %256 = vmatpush1.bf16.msra.mxu0 %v160
        %257 = vmatprep.subr.bf16.mxu0 0
        %258 = vmatpush1.bf16.msra.mxu0 0
        %259 = vmatprep.subr.bf16.mxu0 0
        %260 = vmatpush1.bf16.msra.mxu0 0
        %261 = vmatprep.subr.bf16.mxu0 0
        %262 = vmatpush1.bf16.msra.mxu0 0
        %263 = vmatprep.subr.bf16.mxu0 0
        %264 = vmatpush1.bf16.msra.mxu0 0
        %265 = vmatprep.subr.bf16.mxu0 0
        %266 = vmatpush1.bf16.msra.mxu0 0
        %267 = vmatprep.subr.bf16.mxu0 0
        %268 = vmatpush1.bf16.msra.mxu0 0
        %269 = vmatprep.subr.bf16.mxu0 0
        %270 = vmatpush1.bf16.msra.mxu0 0
        %271 = vmatprep.subr.bf16.mxu0 0
        %272 = vmatpush1.bf16.msra.mxu0 0
        %273 = vmatprep.subr.bf16.mxu0 0
        %274 = vmatpush1.bf16.msra.mxu0 0
        %275 = vmatprep.subr.bf16.mxu0 0
        %276 = vmatpush1.bf16.msra.mxu0 0
        %277 = vmatprep.subr.bf16.mxu0 0
        %278 = vmatpush1.bf16.msra.mxu0 0
        %279 = vmatprep.subr.bf16.mxu0 0
        %280 = vmatpush1.bf16.msra.mxu0 0
        %281 = vmatprep.subr.bf16.mxu0 0
        %282 = vmatpush1.bf16.msra.mxu0 0
        %283 = vmatprep.subr.bf16.mxu0 0
        %284 = vmatpush1.bf16.msra.mxu0 0
        %285 = vmatprep.subr.bf16.mxu0 0
        %286 = vmatpush1.bf16.msra.mxu0 0
        %287 = vmatprep.mubr.bf16.mxu0 0
        %288 = vmatmul.mubr.bf16.gmra.mrb[0].mxu0 %v247
        %v289 = vpop.f32.mrb[0].mxu0
        %v290 = vadd.f32 %v224, %v289
        %v291 = vpop.f32.mrb[0].mxu0
        %v292 = vpop.f32.mrb[0].mxu0
        %v293 = vadd.f32 %v227, %v292
        %v294 = vpop.f32.mrb[0].mxu0
        %295 = vmatprep.mubr.bf16.mxu0 0
        %296 = vmatmul.mubr.bf16.gmra.mrb[0].mxu0 %v250
        %v297 = vpop.f32.mrb[0].mxu0
        %v298 = vadd.f32 %v232, %v297
        %v299 = vpop.f32.mrb[0].mxu0
        %v300 = vpop.f32.mrb[0].mxu0
        %v301 = vadd.f32 %v235, %v300
        %v302 = vpop.f32.mrb[0].mxu0
        %303 = vmatprep.mubr.bf16.mxu0 0
        %304 = vmatmul.mubr.bf16.gmra.mrb[0].mxu0 %v253
        %v305 = vpop.f32.mrb[0].mxu0
        %v306 = vadd.f32 %v240, %v305
        %v307 = vpop.f32.mrb[0].mxu0
        %v308 = vpop.f32.mrb[0].mxu0
        %v309 = vadd.f32 %v243, %v308
        %v310 = vpop.f32.mrb[0].mxu0
        %311 = vdwg.mxu0
        %v312 = vsub.f32 %v142, %v290
        %v313 = vsub.f32 %v143, %v293
        %v314 = vsub.f32 %v144, %v298
        %v315 = vsub.f32 %v145, %v301
        %v316 = vsub.f32 %v146, %v306
        %v317 = vsub.f32 %v147, %v309
        %v318 = vand.u32 2147483647, %v312
        %v319 = vand.u32 2147483647, %v313
        %v320 = vand.u32 2147483647, %v314
        %v321 = vand.u32 2147483647, %v315
        %v322 = vand.u32 2147483647, %v316
        %v323 = vand.u32 2147483647, %v317
        %v324 = vsel %vm179, %v318, 0.0
        %v325 = vsel %vm179, %v319, 0.0
        %v326 = vadd.f32 %v324, %v325
        %v327 = vsel %vm179, %v320, 0.0
        %v328 = vadd.f32 %v326, %v327
        %v329 = vsel %vm179, %v321, 0.0
        %v330 = vadd.f32 %v328, %v329
        %v331 = vsel %vm179, %v322, 0.0
        %v332 = vadd.f32 %v330, %v331
        %v333 = vsel %vm179, %v323, 0.0
        %v334 = vadd.f32 %v332, %v333
        %v335 = vrot.slane %v334, 4
        %v336 = vadd.f32 %v334, %v335
        %v337 = vrot.slane %v336, 2
        %v338 = vadd.f32 %v336, %v337
        %v339 = vrot.slane %v338, 1
        %v340 = vadd.f32 %v338, %v339
        %vm341 = vcmask 122880
        %342 = vst.msk [vmem:[%s135] sm:$0x1] %vm341, %v340
        %s343 = sand.u32 %s71, 1
        %s344 = scalar_lea.sflag [#allocation3], %s343
        %s345 = sand.u32 %s71, 1
        %s346 = scalar_lea.vmem [#allocation2], %s345
        // Predicated region
        $region29: #{tpu_custom_call.1} parent=27 // pred_check
          %p347 = pneg %p81
        $region30: #{tpu_custom_call.1} parent=27 // pred_check_branch
          %349 = sbr.rel (%p347) target = $region32
        $region31: #{tpu_custom_call.1} parent=27 // pred_region
          %s351 = ssub.s32 16, 16
          %352 = vsyncadd %s344, %s351
          %s353 = smul.addr %s16, 16
          %s354 = scalar_lea.hbm %s2, %s353
          %s356 = sshll.u32 %s346, 4
          %s357 = int_to_ptr.vmem [resolvable:$true] %s356
          %359 = dma.vmem_to_hbm [thread:$0]  %s357, 16, %s354, %s344
        $region32: #{tpu_custom_call.1} parent=27 // pred_fallthru
          _
      $region28: #{tpu_custom_call.1} parent=5 // pred_fallthru
        _
      %p360 = scmp.le.s32.totalorder 2, %s11
      // Predicated region
      $region33: #{tpu_custom_call.1} parent=5 // pred_check
        %p361 = pneg %p360
      $region34: #{tpu_custom_call.1} parent=5 // pred_check_branch
        %363 = sbr.rel (%p361) target = $region36
      $region35: #{tpu_custom_call.1} parent=5 // pred_region
        %s364 = ssub.s32 %s11, 2
        // Predicated region
        $region37: #{tpu_custom_call.1} parent=35 // pred_check
          %p365 = pneg %p87
        $region38: #{tpu_custom_call.1} parent=35 // pred_check_branch
          %367 = sbr.rel (%p365) target = $region40
        $region39: #{tpu_custom_call.1} parent=35 // pred_region
          %s368 = sand.u32 %s72, 1
          %s369 = scalar_lea.sflag [#allocation3], %s368
          %s370 = sand.u32 %s72, 1
          %s371 = scalar_lea.vmem [#allocation2], %s370
          %372 = dma.done %s369, 16
        $region40: #{tpu_custom_call.1} parent=35 // pred_fallthru
          _
      $region36: #{tpu_custom_call.1} parent=5 // pred_fallthru
        _
    $region6: #{tpu_custom_call.1} parent=1 // loop_footer
      %s15 = sadd.s32 1, %s11
    $region7: #{tpu_custom_call.1} parent=1 // loop_footer_branch
      %10 = sbr.rel target = $region3
    $region8: #{tpu_custom_call.1} parent=1 // loop_exit
      _
    %373 = vsyncpa [#allocation3], 1
    %s374 = scalar_lea.sflag [#allocation3], 1
    %375 = vsyncpa %s374, 1

</llo_original>
